<compile_context>
chip_gen: v7x
topology: tpu7x:2x2x1
jax: 0.10.0
libtpu: 0.0.40
codegen_flags: <defaults>
</compile_context>

<pallas_src>
from functools import partial

import numpy as np
import jax
import jax.numpy as jnp
from jax.experimental import pallas as pl
from jax.experimental.pallas import tpu as pltpu


_FILT_TABLE = {
    1: [1.0],
    2: [1.0, 1.0],
    3: [1.0, 2.0, 1.0],
    4: [1.0, 3.0, 3.0, 1.0],
    5: [1.0, 4.0, 6.0, 4.0, 1.0],
    6: [1.0, 5.0, 10.0, 10.0, 5.0, 1.0],
    7: [1.0, 6.0, 15.0, 20.0, 15.0, 6.0, 1.0],
}

_MODE = {"refl": "reflect", "reflect": "reflect",
         "repl": "edge", "replicate": "edge", "zero": "constant"}


def _binomial_filter(filt_size: int) -> np.ndarray:
    a = np.asarray(_FILT_TABLE[filt_size], dtype=np.float64)
    return (a / a.sum()).astype(np.float32)


def _round_up(x: int, m: int) -> int:
    return ((x + m - 1) // m) * m


def _vmem_limit_bytes() -> int:
    # 32 MiB is always safe (v7x per-TC VMEM is 64 MiB); allow 64 MiB on
    # v5e / v6e (128 MiB physical).  Fall back to 32 MiB if the query fails.
    try:
        cap = int(pltpu.get_tpu_info().vmem_capacity_bytes)
    except Exception:  # pragma: no cover - conservative fallback
        return 32 * 1024 * 1024
    return int(min(max(cap // 2, 32 * 1024 * 1024), 64 * 1024 * 1024))


def _pad_cols(x2d, pad_l: int, pad_r: int, extra: int, mode: str):
    """Pad (R, L) along the last dim (reflect/edge/zero on both sides) and
    append `extra` zero columns, all in a single concatenate (one HBM pass)."""
    R, L = x2d.shape
    if mode == "reflect" and max(pad_l, pad_r) > L - 1:
        raise ValueError("reflect padding requires pad width <= L - 1")
    parts = []
    if pad_l > 0:
        if mode == "reflect":
            parts.append(x2d[:, 1:pad_l + 1][:, ::-1])
        elif mode == "edge":
            parts.append(jnp.broadcast_to(x2d[:, :1], (R, pad_l)))
        else:
            parts.append(jnp.zeros((R, pad_l), x2d.dtype))
    parts.append(x2d)
    if pad_r > 0:
        if mode == "reflect":
            parts.append(x2d[:, L - 1 - pad_r:L - 1][:, ::-1])
        elif mode == "edge":
            parts.append(jnp.broadcast_to(x2d[:, -1:], (R, pad_r)))
        else:
            parts.append(jnp.zeros((R, pad_r), x2d.dtype))
    if extra > 0:
        parts.append(jnp.zeros((R, extra), x2d.dtype))
    return jnp.concatenate(parts, axis=1)


@partial(jax.jit, static_argnames=("pad_type", "filt_size", "stride", "pad_off"))
def downsample1d(x, *, pad_type="reflect", filt_size=3, stride=2, pad_off=0):
    """JAX/Pallas equivalent of Downsample1D.forward.  x: (N, C, L)."""
    N, C, L = x.shape
    mode = _MODE[pad_type]
    pad_l = int(1.0 * (filt_size - 1) / 2) + pad_off
    pad_r = int(np.ceil(1.0 * (filt_size - 1) / 2)) + pad_off

    if filt_size == 1:
        # Trivial path: (optionally padded) strided slice; no conv hot path.
        if pad_off == 0:
            return x[:, :, ::stride]
        xp = jnp.pad(x, ((0, 0), (0, 0), (pad_l, pad_r)), mode=mode)
        return xp[:, :, ::stride]

    R = N * C
    Lp = L + pad_l + pad_r
    Lout = (Lp - filt_size) // stride + 1
    filt = _binomial_filter(filt_size)

    # ---- tile selection ------------------------------------------------------
    isz = jnp.dtype(x.dtype).itemsize
    SUB = {4: 8, 2: 16, 1: 32}.get(isz, 8)      # dtype-aware sublane granule
    HW = 128                                    # halo width (>= filt_size - stride)
    TL = min(_round_up(Lout, 128), 1024)        # lane tile (output columns)
    TR = min(_round_up(R, SUB), 512)            # sublane tile (rows = N*C)

    def _blk_bytes(tr, tl):                     # rough double-buffered VMEM budget
        return (2 * (stride * tr * (tl + HW) * isz + tr * tl * isz)
                + 3 * tr * (tl + HW) * 4)

    while _blk_bytes(TR, TL) > 24 * 1024 * 1024 and (TL > 128 or TR > SUB):
        if TL > 128:
            TL = max(128, _round_up(TL // 2, 128))
        else:
            TR = max(SUB, _round_up(TR // 2, SUB))

    gj = pl.cdiv(Lout, TL)                      # lane-tile steps
    gi = pl.cdiv(R, TR)                         # row-tile steps
    Mtot = gj * TL + HW                         # phase columns incl. trailing halo
    Ltot = Mtot * stride                        # padded input length

    # ---- glue: pad once, deinterleave the stride phases once -----------------
    x2 = x.reshape(R, L)
    xp = _pad_cols(x2, pad_l, pad_r, Ltot - Lp, mode)         # (R, Ltot), one pass
    ph = jnp.moveaxis(xp.reshape(R, Mtot, stride), -1, 0)     # (stride, R, Mtot)
    # ph[p, r, m] == x_pad[r, m*stride + p]
    # out[r, o]   == sum_k filt[k] * ph[k % stride, r, o + k // stride]

    fw = [float(w) for w in filt]
    n_halo_blocks = TL // HW

    def kernel(main_ref, halo_ref, o_ref):
        # main_ref: (stride, TR, TL)  phase tile for this output tile
        # halo_ref: (stride, TR, HW)  first HW phase columns of the next tile
        acc = None
        ext = {}
        for k in range(filt_size):
            p, q = k % stride, k // stride
            if q == 0:
                tap = main_ref[p]
            else:
                if p not in ext:
                    ext[p] = jnp.concatenate([main_ref[p], halo_ref[p]], axis=-1)
                tap = ext[p][:, q:q + TL]
            term = tap.astype(jnp.float32) * fw[k]
            acc = term if acc is None else acc + term
        o_ref[...] = acc.astype(o_ref.dtype)

    # v7x megacore: put the grid axis with more steps first (both "parallel").
    if gi >= gj:
        grid = (gi, gj)
        main_map = lambda i, j: (0, i, j)
        halo_map = lambda i, j: (0, i, (j + 1) * n_halo_blocks)
        out_map = lambda i, j: (i, j)
    else:
        grid = (gj, gi)
        main_map = lambda j, i: (0, i, j)
        halo_map = lambda j, i: (0, i, (j + 1) * n_halo_blocks)
        out_map = lambda j, i: (i, j)

    flops = (2 * filt_size - 1) * R * Lout
    bytes_accessed = (int(ph.size) * isz            # main phase reads
                      + stride * R * gj * HW * isz  # halo re-reads
                      + R * Lout * isz)             # output writes

    out = pl.pallas_call(
        kernel,
        out_shape=jax.ShapeDtypeStruct((R, Lout), x.dtype),
        grid=grid,
        in_specs=[
            pl.BlockSpec((stride, TR, TL), main_map),
            pl.BlockSpec((stride, TR, HW), halo_map),
        ],
        out_specs=pl.BlockSpec((TR, TL), out_map),
        compiler_params=pltpu.CompilerParams(
            dimension_semantics=("parallel", "parallel"),
            vmem_limit_bytes=_vmem_limit_bytes(),
        ),
        cost_estimate=pl.CostEstimate(
            flops=flops, transcendentals=0, bytes_accessed=bytes_accessed),
    )(ph, ph)

    return out.reshape(N, C, Lout)


def _reference(x, *, pad_type="reflect", filt_size=3, stride=2, pad_off=0):
    """Pure-JAX reference of the PyTorch forward (pad + depthwise strided conv)."""
    pad_l = int(1.0 * (filt_size - 1) / 2) + pad_off
    pad_r = int(np.ceil(1.0 * (filt_size - 1) / 2)) + pad_off
    mode = _MODE[pad_type]
    if filt_size == 1:
        if pad_off == 0:
            return x[:, :, ::stride]
        return jnp.pad(x, ((0, 0), (0, 0), (pad_l, pad_r)), mode=mode)[:, :, ::stride]
    xp = jnp.pad(x, ((0, 0), (0, 0), (pad_l, pad_r)), mode=mode).astype(jnp.float32)
    filt = jnp.asarray(_binomial_filter(filt_size))
    Lp = xp.shape[-1]
    Lout = (Lp - filt_size) // stride + 1
    acc = sum(filt[k] * xp[:, :, k:k + stride * (Lout - 1) + 1:stride]
              for k in range(filt_size))
    return acc.astype(x.dtype)


if __name__ == "__main__":
    key = jax.random.PRNGKey(0)
    k1, k2, k3, k4 = jax.random.split(key, 4)

    def _check(x, tol, **kw):
        out = jax.block_until_ready(downsample1d(x, **kw))
        ref = _reference(x, **kw)
        assert out.shape == ref.shape, (out.shape, ref.shape)
        np.testing.assert_allclose(np.asarray(out.astype(jnp.float32)),
                                   np.asarray(ref.astype(jnp.float32)),
                                   rtol=tol, atol=tol)

    # canonical config (module defaults): reflect pad, filt 3, stride 2
    x1 = jax.random.normal(k1, (2, 4, 16), dtype=jnp.float32)
    _check(x1, 1e-5, pad_type="reflect", filt_size=3, stride=2, pad_off=0)
    assert downsample1d(x1).shape == (2, 4, 8)

    # replicate pad, odd filter, non-divisible length (ragged edge blocks)
    x2 = jax.random.normal(k2, (3, 5, 35), dtype=jnp.float32)
    _check(x2, 1e-5, pad_type="replicate", filt_size=5, stride=2, pad_off=0)

    # zero pad, even filter, bf16 input (dtype-aware sublane tiling path)
    x3 = jax.random.normal(k3, (2, 3, 20), dtype=jnp.bfloat16)
    _check(x3, 2e-2, pad_type="zero", filt_size=4, stride=2, pad_off=0)

    # long sequence: multiple lane tiles -> exercises the halo + grid ordering
    x4 = jax.random.normal(k4, (1, 2, 2500), dtype=jnp.float32)
    _check(x4, 1e-5, pad_type="reflect", filt_size=3, stride=2, pad_off=0)

    print("KERNEL_OK")
</pallas_src>

<mosaic_0001>
module attributes {stable_mosaic.version = 11 : i64} {
  func.func @kernel(%arg0: i32, %arg1: i32, %arg2: memref<2x8x128xf32, #tpu.memory_space<vmem>>, %arg3: memref<2x8x128xf32, #tpu.memory_space<vmem>>, %arg4: memref<8x128xf32, #tpu.memory_space<vmem>>) attributes {dimension_semantics = [#tpu.dimension_semantics<parallel>, #tpu.dimension_semantics<parallel>], iteration_bounds = array<i64: 1, 1>, scalar_prefetch = 0 : i64, scratch_operands = 0 : i64, tpu.core_type = #tpu.core_type<tc>, window_params = [{transform_indices = @transform_0, window_bounds = array<i64: 2, 8, 128>}, {transform_indices = @transform_1, window_bounds = array<i64: 2, 8, 128>}, {transform_indices = @transform_2, window_bounds = array<i64: 8, 128>}]} {
    %c0 = arith.constant 0 : index
    %c0_0 = arith.constant 0 : index
    %c0_1 = arith.constant 0 : index
    %0 = vector.load %arg2[%c0, %c0_0, %c0_1] : memref<2x8x128xf32, #tpu.memory_space<vmem>>, vector<1x8x128xf32>
    %1 = vector.shape_cast %0 : vector<1x8x128xf32> to vector<8x128xf32>
    %cst = arith.constant 2.500000e-01 : f32
    %2 = vector.broadcast %cst : f32 to vector<8x128xf32>
    %3 = arith.mulf %1, %2 : vector<8x128xf32>
    %c1 = arith.constant 1 : index
    %c0_2 = arith.constant 0 : index
    %c0_3 = arith.constant 0 : index
    %4 = vector.load %arg2[%c1, %c0_2, %c0_3] : memref<2x8x128xf32, #tpu.memory_space<vmem>>, vector<1x8x128xf32>
    %5 = vector.shape_cast %4 : vector<1x8x128xf32> to vector<8x128xf32>
    %cst_4 = arith.constant 5.000000e-01 : f32
    %6 = vector.broadcast %cst_4 : f32 to vector<8x128xf32>
    %7 = arith.mulf %5, %6 : vector<8x128xf32>
    %8 = arith.addf %3, %7 : vector<8x128xf32>
    %c0_5 = arith.constant 0 : index
    %c0_6 = arith.constant 0 : index
    %c0_7 = arith.constant 0 : index
    %9 = vector.load %arg2[%c0_5, %c0_6, %c0_7] : memref<2x8x128xf32, #tpu.memory_space<vmem>>, vector<1x8x128xf32>
    %10 = vector.shape_cast %9 : vector<1x8x128xf32> to vector<8x128xf32>
    %c0_8 = arith.constant 0 : index
    %c0_9 = arith.constant 0 : index
    %c0_10 = arith.constant 0 : index
    %11 = vector.load %arg3[%c0_8, %c0_9, %c0_10] : memref<2x8x128xf32, #tpu.memory_space<vmem>>, vector<1x8x128xf32>
    %12 = vector.shape_cast %11 : vector<1x8x128xf32> to vector<8x128xf32>
    %13 = tpu.concatenate %10, %12 in 1 : vector<8x128xf32>, vector<8x128xf32> -> vector<8x256xf32>
    %14 = vector.extract_strided_slice %13 {offsets = [0, 1], sizes = [8, 128], strides = [1, 1]} : vector<8x256xf32> to vector<8x128xf32>
    %cst_11 = arith.constant 2.500000e-01 : f32
    %15 = vector.broadcast %cst_11 : f32 to vector<8x128xf32>
    %16 = arith.mulf %14, %15 : vector<8x128xf32>
    %17 = arith.addf %8, %16 : vector<8x128xf32>
    %c0_12 = arith.constant 0 : index
    %c0_13 = arith.constant 0 : index
    %18 = vector.load %arg4[%c0_12, %c0_13] : memref<8x128xf32, #tpu.memory_space<vmem>>, vector<8x128xf32>
    tpu.vector_store %arg4[%c0_12, %c0_13], %17 {strides = array<i32>} : memref<8x128xf32, #tpu.memory_space<vmem>>, vector<8x128xf32>,
    return
  }
  func.func @transform_0(%arg0: i32, %arg1: i32) -> (i32, i32, i32) {
    %c0_i32 = arith.constant 0 : i32
    %c0_i32_0 = arith.constant 0 : i32
    return %c0_i32, %arg0, %arg1 : i32, i32, i32
  }
  func.func @transform_1(%arg0: i32, %arg1: i32) -> (i32, i32, i32) {
    %c1_i32 = arith.constant 1 : i32
    %0 = arith.addi %arg1, %c1_i32 : i32
    %c1_i32_0 = arith.constant 1 : i32
    %1 = arith.muli %0, %c1_i32_0 : i32
    %c0_i32 = arith.constant 0 : i32
    %c0_i32_1 = arith.constant 0 : i32
    return %c0_i32, %arg0, %1 : i32, i32, i32
  }
  func.func @transform_2(%arg0: i32, %arg1: i32) -> (i32, i32) {
    %c0_i32 = arith.constant 0 : i32
    return %arg0, %arg1 : i32, i32
  }
}

</mosaic_0001>

<llo_original>
// kernel: downsample1d.1
$region0: #{downsample1d.1}
  #allocation0 [shape = 'u32[]', space=smem, size = 0x4, offset = 0x4, fixed_abs, tag = 'smem constant byte address 0x4 - core index']
  #allocation1 [shape = 'u32[144,128]{1,0:T(1,128)}', space=vmem, size = 0x12000, scoped, tag = 'internal scratch']
  %s0 = inlined_call_operand.vmem [shape: f32[2,8,256], index: 0, kind: input, shape index: {}, may-alias: {0,1}]
  %s1 = inlined_call_operand.vmem [shape: f32[2,8,256], index: 1, kind: input, shape index: {}, may-alias: {0,1}]
  %s2 = inlined_call_operand.hbm [shape: f32[8,8], index: 2, kind: output, shape index: {}]
  %s3 = sld [smem:[#allocation0]]
  $region94: #{downsample1d.1} parent=0
    _
  %s5 = ssub.s32 1, %s3
  %s6 = scalar_select 0, %s5, %s3
  $region1: #{downsample1d.1} parent=0
    #allocation2 [shape = 'u8[8192]{0}', space=vmem, size = 0x2000, scoped, tag = 'input window, operand 0, single buffered']
    #allocation3 [shape = 'u8[8192]{0}', space=vmem, size = 0x2000, scoped, tag = 'input window, operand 1, single buffered']
    #allocation4 [shape = 'u8[4096]{0}', space=vmem, size = 0x1000, scoped, tag = 'output window, operand 0, single buffered']
    #allocation5 [shape = 's32[1]{0}', space=sflag, size = 0x4, scoped, tag = 'scoped memory for downsample1d.1']
    %7 = vsyncpa [#allocation5], 0
    // Predicated region
    $region2: #{downsample1d.1} parent=1 // pred_check
      _
    $region3: #{downsample1d.1} parent=1 // pred_check_branch
      %9 = sbr.rel (0) target = $region5
    $region4: #{downsample1d.1} parent=1 // pred_region
      // Predicated region
      $region6: #{downsample1d.1} parent=4 // pred_check
        _
      $region7: #{downsample1d.1} parent=4 // pred_check_branch
        %11 = sbr.rel (0) target = $region9
      $region8: #{downsample1d.1} parent=4 // pred_region
        // Predicated region
        $region10: #{downsample1d.1} parent=8 // pred_check
          _
        $region11: #{downsample1d.1} parent=8 // pred_check_branch
          %13 = sbr.rel (0) target = $region13
        $region12: #{downsample1d.1} parent=8 // pred_region
          // Predicated region
          $region25: #{downsample1d.1} parent=12 // pred_check
            _
          $region26: #{downsample1d.1} parent=12 // pred_check_branch
            %30 = sbr.rel (0) target = $region28
          $region27: #{downsample1d.1} parent=12 // pred_region
            loop: start=0, step=1, limit=1
            $region29: #{downsample1d.1} parent=27 // loop_pre_header
              _
            $region30: #{downsample1d.1} parent=27 // loop_header
              %s32 = sphi 0, %s36
              %p33 = scmp.ge.s32.totalorder %s32, 1
              %s37 = sphi %s0, %s0
              %s38 = sphi [#allocation2], [#allocation2]
            $region31: #{downsample1d.1} parent=27 // loop_header_branch
              %35 = sbr.rel (%p33) target = $region35
            $region32: #{downsample1d.1} parent=27 // loop_body
              %v39 = vld [vmem:[%s37] sm:$0xff]
              %40 = vst [vmem:[%s38] sm:$0xff] %v39
              %v41 = vld [vmem:[%s37 + $0x10] sm:$0xff]
              %42 = vst [vmem:[%s38 + $0x8] sm:$0xff] %v41
            $region33: #{downsample1d.1} parent=27 // loop_footer
              %s36 = sadd.s32 1, %s32
            $region34: #{downsample1d.1} parent=27 // loop_footer_branch
              %31 = sbr.rel target = $region30
            $region35: #{downsample1d.1} parent=27 // loop_exit
              _
          $region28: #{downsample1d.1} parent=12 // pred_fallthru
            _
          // Predicated region
          $region36: #{downsample1d.1} parent=12 // pred_check
            _
          $region37: #{downsample1d.1} parent=12 // pred_check_branch
            %44 = sbr.rel target = $region39
          $region38: #{downsample1d.1} parent=12 // pred_region
            _
          $region39: #{downsample1d.1} parent=12 // pred_fallthru
            _
        $region13: #{downsample1d.1} parent=8 // pred_fallthru
          _
        // Predicated region
        $region14: #{downsample1d.1} parent=8 // pred_check
          _
        $region15: #{downsample1d.1} parent=8 // pred_check_branch
          %15 = sbr.rel target = $region17
        $region16: #{downsample1d.1} parent=8 // pred_region
          loop: start=0, step=1, limit=1
          $region18: #{downsample1d.1} parent=16 // loop_pre_header
            _
          $region19: #{downsample1d.1} parent=16 // loop_header
            %s18 = sphi 0, %s22
            %p19 = scmp.ge.s32.totalorder %s18, 1
            %s23 = sphi %s0, %s0
            %s24 = sphi [#allocation2], [#allocation2]
          $region20: #{downsample1d.1} parent=16 // loop_header_branch
            %21 = sbr.rel (%p19) target = $region24
          $region21: #{downsample1d.1} parent=16 // loop_body
            %v25 = vld [vmem:[%s23] sm:$0xff]
            %26 = vst [vmem:[%s24] sm:$0xff] %v25
            %v27 = vld [vmem:[%s23 + $0x10] sm:$0xff]
            %28 = vst [vmem:[%s24 + $0x8] sm:$0xff] %v27
          $region22: #{downsample1d.1} parent=16 // loop_footer
            %s22 = sadd.s32 1, %s18
          $region23: #{downsample1d.1} parent=16 // loop_footer_branch
            %17 = sbr.rel target = $region19
          $region24: #{downsample1d.1} parent=16 // loop_exit
            _
        $region17: #{downsample1d.1} parent=8 // pred_fallthru
          _
      $region9: #{downsample1d.1} parent=4 // pred_fallthru
        _
      %45 = vnop
    $region5: #{downsample1d.1} parent=1 // pred_fallthru
      _
    // Predicated region
    $region40: #{downsample1d.1} parent=1 // pred_check
      _
    $region41: #{downsample1d.1} parent=1 // pred_check_branch
      %47 = sbr.rel (0) target = $region43
    $region42: #{downsample1d.1} parent=1 // pred_region
      %s48 = sadd.s32 0, 1
      %s49 = smul.addr %s48, 8
      %s50 = scalar_lea.vmem %s1, %s49
      // Predicated region
      $region44: #{downsample1d.1} parent=42 // pred_check
        _
      $region45: #{downsample1d.1} parent=42 // pred_check_branch
        %52 = sbr.rel (0) target = $region47
      $region46: #{downsample1d.1} parent=42 // pred_region
        // Predicated region
        $region48: #{downsample1d.1} parent=46 // pred_check
          _
        $region49: #{downsample1d.1} parent=46 // pred_check_branch
          %54 = sbr.rel (0) target = $region51
        $region50: #{downsample1d.1} parent=46 // pred_region
          // Predicated region
          $region63: #{downsample1d.1} parent=50 // pred_check
            _
          $region64: #{downsample1d.1} parent=50 // pred_check_branch
            %71 = sbr.rel (0) target = $region66
          $region65: #{downsample1d.1} parent=50 // pred_region
            loop: start=0, step=1, limit=1
            $region67: #{downsample1d.1} parent=65 // loop_pre_header
              _
            $region68: #{downsample1d.1} parent=65 // loop_header
              %s73 = sphi 0, %s77
              %p74 = scmp.ge.s32.totalorder %s73, 1
              %s78 = sphi %s50, %s50
              %s79 = sphi [#allocation3], [#allocation3]
            $region69: #{downsample1d.1} parent=65 // loop_header_branch
              %76 = sbr.rel (%p74) target = $region73
            $region70: #{downsample1d.1} parent=65 // loop_body
              %v80 = vld [vmem:[%s78] sm:$0xff]
              %81 = vst [vmem:[%s79] sm:$0xff] %v80
              %v82 = vld [vmem:[%s78 + $0x10] sm:$0xff]
              %83 = vst [vmem:[%s79 + $0x8] sm:$0xff] %v82
            $region71: #{downsample1d.1} parent=65 // loop_footer
              %s77 = sadd.s32 1, %s73
            $region72: #{downsample1d.1} parent=65 // loop_footer_branch
              %72 = sbr.rel target = $region68
            $region73: #{downsample1d.1} parent=65 // loop_exit
              _
          $region66: #{downsample1d.1} parent=50 // pred_fallthru
            _
          // Predicated region
          $region74: #{downsample1d.1} parent=50 // pred_check
            _
          $region75: #{downsample1d.1} parent=50 // pred_check_branch
            %85 = sbr.rel target = $region77
          $region76: #{downsample1d.1} parent=50 // pred_region
            _
          $region77: #{downsample1d.1} parent=50 // pred_fallthru
            _
        $region51: #{downsample1d.1} parent=46 // pred_fallthru
          _
        // Predicated region
        $region52: #{downsample1d.1} parent=46 // pred_check
          _
        $region53: #{downsample1d.1} parent=46 // pred_check_branch
          %56 = sbr.rel target = $region55
        $region54: #{downsample1d.1} parent=46 // pred_region
          loop: start=0, step=1, limit=1
          $region56: #{downsample1d.1} parent=54 // loop_pre_header
            _
          $region57: #{downsample1d.1} parent=54 // loop_header
            %s59 = sphi 0, %s63
            %p60 = scmp.ge.s32.totalorder %s59, 1
            %s64 = sphi %s50, %s50
            %s65 = sphi [#allocation3], [#allocation3]
          $region58: #{downsample1d.1} parent=54 // loop_header_branch
            %62 = sbr.rel (%p60) target = $region62
          $region59: #{downsample1d.1} parent=54 // loop_body
            %v66 = vld [vmem:[%s64] sm:$0xff]
            %67 = vst [vmem:[%s65] sm:$0xff] %v66
            %v68 = vld [vmem:[%s64 + $0x10] sm:$0xff]
            %69 = vst [vmem:[%s65 + $0x8] sm:$0xff] %v68
          $region60: #{downsample1d.1} parent=54 // loop_footer
            %s63 = sadd.s32 1, %s59
          $region61: #{downsample1d.1} parent=54 // loop_footer_branch
            %58 = sbr.rel target = $region57
          $region62: #{downsample1d.1} parent=54 // loop_exit
            _
        $region55: #{downsample1d.1} parent=46 // pred_fallthru
          _
      $region47: #{downsample1d.1} parent=42 // pred_fallthru
        _
      %86 = vnop
    $region43: #{downsample1d.1} parent=1 // pred_fallthru
      _
    // Predicated region
    $region78: #{downsample1d.1} parent=1 // pred_check
      _
    $region79: #{downsample1d.1} parent=1 // pred_check_branch
      %88 = sbr.rel (0) target = $region81
    $region80: #{downsample1d.1} parent=1 // pred_region
      _
    $region81: #{downsample1d.1} parent=1 // pred_fallthru
      _
    // Predicated region
    $region82: #{downsample1d.1} parent=1 // pred_check
      _
    $region83: #{downsample1d.1} parent=1 // pred_check_branch
      %90 = sbr.rel (0) target = $region85
    $region84: #{downsample1d.1} parent=1 // pred_region
      _
    $region85: #{downsample1d.1} parent=1 // pred_fallthru
      _
    %s91 = sadd.s32 0, 1
    %v92 = vld [vmem:[#allocation2] sm:$0xff]
    %v93 = vmul.f32 %v92, 0.25
    %s94 = scalar_lea.vmem [#allocation2], 8
    %v95 = vld [vmem:[%s94] sm:$0xff]
    %v96 = vmul.f32 %v95, 0.5
    %v97 = vadd.f32 %v93, %v96
    %v98 = vld [vmem:[#allocation3] sm:$0xff]
    %v99 = vmul.f32 %v98, 0.25
    %102 = vrot.lane.b32.xlu0 %v93, 127
    %v103 = vpop.permute.xlu0 %102
    %104 = vrot.lane.b32.xlu0 %v99, 127
    %v105 = vpop.permute.xlu0 %104
    %vm106 = vcmask 1039360
    %v107 = vsel %vm106, %v103, %v105
    %v109 = vadd.f32 %v97, %v107
    %110 = vst [vmem:[#allocation4] sm:$0xff] %v109
    // Predicated region
    $region86: #{downsample1d.1} parent=1 // pred_check
      _
    $region87: #{downsample1d.1} parent=1 // pred_check_branch
      %112 = sbr.rel (0) target = $region89
    $region88: #{downsample1d.1} parent=1 // pred_region
      %s114 = ssub.s32 128, 128
      %115 = vsyncadd [#allocation5], %s114
      %s117 = sshll.u32 [#allocation4], 4
      %s118 = int_to_ptr.vmem [resolvable:$true] %s117
      %120 = dma.vmem_to_hbm [thread:$0]  %s118, 128, %s2, [#allocation5]
    $region89: #{downsample1d.1} parent=1 // pred_fallthru
      _
    // Predicated region
    $region90: #{downsample1d.1} parent=1 // pred_check
      _
    $region91: #{downsample1d.1} parent=1 // pred_check_branch
      %122 = sbr.rel (0) target = $region93
    $region92: #{downsample1d.1} parent=1 // pred_region
      %123 = dma.done [#allocation5], 128
    $region93: #{downsample1d.1} parent=1 // pred_fallthru
      _
    %124 = vsyncpa [#allocation5], 1

</llo_original>
